<compile_context>
chip_gen: v5e
topology: v5e:2x2
jax: 0.10.0
libtpu: 0.0.40
codegen_flags: <defaults>
</compile_context>

<pallas_src>
import jax
import jax.numpy as jnp
from jax import lax
from jax.experimental import pallas as pl
from jax.experimental.pallas import tpu as pltpu

# ---- opt.* hyperparameters (deterministic, in-script) -----------------------
BATCH_SIZE = 32            # opt.batch_size  (number of scenarios = PNL samples)
T_STEPS    = 8             # length of the return path
N_ASSETS   = 4             # number of tickers
ALPHAS     = (0.05, 0.10)  # opt.alphas
W_PROJ     = 2.0           # opt.W
TEMP       = 0.1           # opt.temp  (NeuralSort temperature)
CAP        = 1000.0        # opt.Cap
PROJECT    = True          # opt.project
P0         = 100.0         # initial price used by Inc2Price

N_STRATEGIES = 2                       # BuyHold + equal-weight-portfolio BuyHold
K_OUT        = 2 * len(ALPHAS)
ALPHA_IDX    = tuple(int(a * BATCH_SIZE) for a in ALPHAS)
assert all(ia >= 1 for ia in ALPHA_IDX), "alpha * batch_size must floor to >= 1"

# TODO(synk): MR / TF / StaticPort strategy PNLs require gen_thresholds() data
# files and argparse config with no in-script equivalent; only the BuyHold and
# equal-weight-portfolio BuyHold PnL columns are produced.


# =============================================================================
# Fused discriminator kernel
# =============================================================================
def _discriminator_kernel(r_ref, pnl_ref, validity_ref):
    n = BATCH_SIZE
    a = N_ASSETS
    s = N_STRATEGIES

    # ---------------- Inc2Price + Compute_PNL (fused, no cumprod) ------------
    # r_ref: (N, T*A); slice t = x[:, t*A:(t+1)*A].
    x = 1.0 + r_ref[...]                                   # (N, T*A)
    first = P0 * x[:, 0:a]                                 # (N, A) prices at t=0
    ratio = x[:, a:2 * a]                                  # prod_{t>=1}(1+R_t) = last/first
    for t in range(2, T_STEPS):                            # unrolled (T static)
        ratio = ratio * x[:, t * a:(t + 1) * a]
    last = first * ratio                                   # (N, A) prices at t=T-1

    # BuyHold: capital spread equally across assets, held to the end.
    bh = CAP * (jnp.mean(ratio, axis=1, keepdims=True) - 1.0)            # (N,1)
    # Portfolio BuyHold: buy-and-hold of the equal-weight portfolio price.
    mean_first = jnp.mean(first, axis=1, keepdims=True)                  # (N,1)
    mean_last = jnp.mean(last, axis=1, keepdims=True)                    # (N,1)
    port = CAP * (mean_last / mean_first - 1.0)                          # (N,1)

    lane_s = lax.broadcasted_iota(jnp.int32, (n, s), 1)
    pnl_ref[...] = jnp.where(lane_s == 0, bh, port)        # single (N,S) store

    # --------- deterministic NeuralSort, both strategies packed on lanes -----
    lane2 = lax.broadcasted_iota(jnp.int32, (n, 2 * n), 1)     # packed lane j*N+m
    sub2 = lax.broadcasted_iota(jnp.int32, (n, 2 * n), 0)      # scenario i (sublane)
    in_a = lane2 < n                                           # strategy-0 block mask

    # colmat[i, j*N+m] = pnl_j[i]
    colmat = jnp.where(in_a, bh, port)                                   # (N,2N)
    # rowvec[0, j*N+m] = pnl_j[m]  (transpose-free: masked diagonal + sublane sum)
    eye2 = (lane2 == sub2) | (lane2 == sub2 + n)
    rowvec = jnp.sum(jnp.where(eye2, colmat, 0.0), axis=0, keepdims=True)  # (1,2N)

    a_abs = jnp.abs(colmat - rowvec)                                     # |s_i - s_m|
    rsum = jnp.sum(a_abs, axis=0, keepdims=True)                         # (1,2N)

    ridx = lax.broadcasted_iota(jnp.int32, (n, 1), 0)                    # (N,1)
    scaling = jnp.float32(n - 1) - 2.0 * ridx.astype(jnp.float32)        # (N,1)

    # P_max[i, j*N+m] = s_j[m]*scaling[i] - sum_k |s_j[m] - s_j[k]|
    logits = (rowvec * scaling - rsum) * jnp.float32(1.0 / TEMP)         # (N,2N)

    # per-strategy, per-row max (masked) for a stable softmax
    neg = jnp.float32(-1e30)
    m_a = jnp.max(jnp.where(in_a, logits, neg), axis=1, keepdims=True)   # (N,1)
    m_b = jnp.max(jnp.where(in_a, neg, logits), axis=1, keepdims=True)   # (N,1)
    e = jnp.exp(logits - jnp.where(in_a, m_a, m_b))                      # one exp, (N,2N)

    den_a = jnp.sum(jnp.where(in_a, e, 0.0), axis=1, keepdims=True)      # (N,1)
    den_b = jnp.sum(e, axis=1, keepdims=True) - den_a                    # (N,1)

    # PNL_sort = perm @ PNL  ==  (sum_m e[i,m]*s[m]) / (sum_m e[i,m])  (VPU+XLU, no MXU)
    z = e * rowvec
    num_a = jnp.sum(jnp.where(in_a, z, 0.0), axis=1, keepdims=True)
    num_b = jnp.sum(z, axis=1, keepdims=True) - num_a
    sort_a = num_a * pl.reciprocal(den_a, approx=True)                   # (N,1) BuyHold
    sort_b = num_b * pl.reciprocal(den_b, approx=True)                   # (N,1) Port

    # ---------------- Emp_VaR_ES + project_op, single (S,K) store ------------
    srow = lax.broadcasted_iota(jnp.int32, (s, K_OUT), 0)
    scol = lax.broadcasted_iota(jnp.int32, (s, K_OUT), 1)
    out = jnp.zeros((s, K_OUT), jnp.float32)
    inv_wden = 1.0 / (1.0 + W_PROJ * W_PROJ)

    for k, srt in enumerate((sort_a, sort_b)):
        for j, (alpha, ia) in enumerate(zip(ALPHAS, ALPHA_IDX)):
            # VaR = PNL_sort[-ia]; ES = mean(PNL_sort[-ia:])
            var = jnp.sum(jnp.where(ridx == n - ia, srt, 0.0),
                          axis=0, keepdims=True)                         # (1,1)
            if ia == 1:
                es = var                                                 # tail of size 1
            else:
                tail = jnp.sum(jnp.where(ridx >= n - ia, srt, 0.0),
                               axis=0, keepdims=True)
                es = tail * jnp.float32(1.0 / ia)                        # static 1/ia
            if PROJECT:
                ind = 1.0 if alpha < 0.5 else (0.0 if alpha == 0.5 else -1.0)
                cond = (W_PROJ * var) < es
                mix = (var + W_PROJ * es) * inv_wden
                v_new = ind * jnp.where(cond, var, mix)
                e_new = ind * jnp.where(cond, es, W_PROJ * mix)
            else:
                v_new, e_new = var, es
            out = jnp.where((srow == k) & (scol == 2 * j), v_new, out)
            out = jnp.where((srow == k) & (scol == 2 * j + 1), e_new, out)

    validity_ref[...] = out                                  # single (S,K) store


def discriminator_forward(R):
    """Returns (PNL, PNL_validity) like Discriminator.forward."""
    n, t_steps, a = R.shape
    assert (n, t_steps, a) == (BATCH_SIZE, T_STEPS, N_ASSETS)
    r2 = R.reshape(n, t_steps * a)        # contiguous reshape (free); kernel slices per t

    cost = pl.CostEstimate(
        flops=int(12 * N_STRATEGIES * n * n + 6 * n * t_steps * a),
        transcendentals=int(N_STRATEGIES * n * n),
        bytes_accessed=int(4 * (n * t_steps * a + n * N_STRATEGIES
                                + N_STRATEGIES * K_OUT)),
    )
    pnl, validity = pl.pallas_call(
        _discriminator_kernel,
        out_shape=(jax.ShapeDtypeStruct((n, N_STRATEGIES), jnp.float32),
                   jax.ShapeDtypeStruct((N_STRATEGIES, K_OUT), jnp.float32)),
        in_specs=[pl.BlockSpec(memory_space=pltpu.MemorySpace.VMEM)],
        out_specs=(pl.BlockSpec(memory_space=pltpu.MemorySpace.VMEM),
                   pl.BlockSpec(memory_space=pltpu.MemorySpace.VMEM)),
        cost_estimate=cost,
    )(r2)
    return pnl, validity


# =============================================================================
# Pure-JAX reference (mirrors the PyTorch semantics) for a sanity check
# =============================================================================
def _reference(R):
    prices = P0 * jnp.cumprod(1.0 + R, axis=1)
    first, last = prices[:, 0, :], prices[:, -1, :]
    bh = CAP * jnp.mean(last / first - 1.0, axis=1, keepdims=True)
    port = CAP * (jnp.mean(last, axis=1, keepdims=True) /
                  jnp.mean(first, axis=1, keepdims=True) - 1.0)
    pnl = jnp.concatenate([bh, port], axis=1)                    # (N, S)

    pnl_s = pnl.T[..., None]                                     # (S, N, 1)
    n = pnl.shape[0]
    one = jnp.ones((n, 1), jnp.float32)
    A_s = jnp.abs(pnl_s - jnp.transpose(pnl_s, (0, 2, 1)))
    B = A_s @ (one @ one.T)
    scaling = (n + 1 - 2 * (jnp.arange(n) + 1)).astype(jnp.float32)
    C = pnl_s @ scaling[None, :]
    P_max = jnp.transpose(C - B, (0, 2, 1))
    P_hat = jax.nn.softmax(P_max / TEMP, axis=-1)
    pnl_sort = P_hat @ pnl_s                                     # (S, N, 1)

    rows = []
    for k in range(pnl.shape[1]):
        srt = pnl_sort[k, :, 0]
        vals = []
        for alpha in ALPHAS:
            ia = int(alpha * BATCH_SIZE)
            vals.append(srt[-ia])
            vals.append(jnp.mean(srt[-ia:]))
        rows.append(jnp.stack(vals))
    validity = jnp.stack(rows, axis=0)

    if PROJECT:
        cols = []
        for j, alpha in enumerate(ALPHAS):
            v = validity[:, 2 * j]
            e = validity[:, 2 * j + 1]
            ind = jnp.sign(0.5 - alpha)
            cond = (W_PROJ * v) < e
            denom = 1.0 + W_PROJ ** 2
            cols.append(ind * jnp.where(cond, v, (v + W_PROJ * e) / denom))
            cols.append(ind * jnp.where(cond, e, W_PROJ * (v + W_PROJ * e) / denom))
        validity = jnp.stack(cols, axis=1)
    return pnl, validity


if __name__ == "__main__":
    key = jax.random.PRNGKey(0)
    R = 0.01 * jax.random.normal(key, (BATCH_SIZE, T_STEPS, N_ASSETS), jnp.float32)

    fwd = jax.jit(discriminator_forward)
    pnl, validity = fwd(R)
    pnl = jax.block_until_ready(pnl)
    validity = jax.block_until_ready(validity)

    pnl_ref, validity_ref = _reference(R)
    assert pnl.shape == (BATCH_SIZE, N_STRATEGIES)
    assert validity.shape == (N_STRATEGIES, K_OUT)
    assert bool(jnp.all(jnp.isfinite(pnl))) and bool(jnp.all(jnp.isfinite(validity)))
    # approx-reciprocal (EUP) softmax normalization => slightly looser validity tol
    assert jnp.allclose(pnl, pnl_ref, rtol=1e-4, atol=1e-2)
    assert jnp.allclose(validity, validity_ref, rtol=5e-3, atol=5e-2)

    print("KERNEL_OK")
</pallas_src>

<mosaic_0001>
module attributes {stable_mosaic.version = 11 : i64} {
  func.func @_discriminator_kernel(%arg0: memref<32x32xf32, #tpu.memory_space<vmem>>, %arg1: memref<32x2xf32, #tpu.memory_space<vmem>>, %arg2: memref<2x4xf32, #tpu.memory_space<vmem>>) attributes {dimension_semantics = [], scalar_prefetch = 0 : i64, scratch_operands = 0 : i64, tpu.core_type = #tpu.core_type<tc>} {
    %c0 = arith.constant 0 : index
    %c0_0 = arith.constant 0 : index
    %0 = vector.load %arg0[%c0, %c0_0] : memref<32x32xf32, #tpu.memory_space<vmem>>, vector<32x32xf32>
    %cst = arith.constant 1.000000e+00 : f32
    %1 = vector.broadcast %cst : f32 to vector<32x32xf32>
    %2 = arith.addf %1, %0 : vector<32x32xf32>
    %3 = vector.extract_strided_slice %2 {offsets = [0, 0], sizes = [32, 4], strides = [1, 1]} : vector<32x32xf32> to vector<32x4xf32>
    %cst_1 = arith.constant 1.000000e+02 : f32
    %4 = vector.broadcast %cst_1 : f32 to vector<32x4xf32>
    %5 = arith.mulf %4, %3 : vector<32x4xf32>
    %6 = vector.extract_strided_slice %2 {offsets = [0, 4], sizes = [32, 4], strides = [1, 1]} : vector<32x32xf32> to vector<32x4xf32>
    %7 = vector.extract_strided_slice %2 {offsets = [0, 8], sizes = [32, 4], strides = [1, 1]} : vector<32x32xf32> to vector<32x4xf32>
    %8 = arith.mulf %6, %7 : vector<32x4xf32>
    %9 = vector.extract_strided_slice %2 {offsets = [0, 12], sizes = [32, 4], strides = [1, 1]} : vector<32x32xf32> to vector<32x4xf32>
    %10 = arith.mulf %8, %9 : vector<32x4xf32>
    %11 = vector.extract_strided_slice %2 {offsets = [0, 16], sizes = [32, 4], strides = [1, 1]} : vector<32x32xf32> to vector<32x4xf32>
    %12 = arith.mulf %10, %11 : vector<32x4xf32>
    %13 = vector.extract_strided_slice %2 {offsets = [0, 20], sizes = [32, 4], strides = [1, 1]} : vector<32x32xf32> to vector<32x4xf32>
    %14 = arith.mulf %12, %13 : vector<32x4xf32>
    %15 = vector.extract_strided_slice %2 {offsets = [0, 24], sizes = [32, 4], strides = [1, 1]} : vector<32x32xf32> to vector<32x4xf32>
    %16 = arith.mulf %14, %15 : vector<32x4xf32>
    %17 = vector.extract_strided_slice %2 {offsets = [0, 28], sizes = [32, 4], strides = [1, 1]} : vector<32x32xf32> to vector<32x4xf32>
    %18 = arith.mulf %16, %17 : vector<32x4xf32>
    %19 = arith.mulf %5, %18 : vector<32x4xf32>
    %cst_2 = arith.constant dense<0.000000e+00> : vector<32xf32>
    %20 = vector.multi_reduction <add>, %18, %cst_2 [1] : vector<32x4xf32> to vector<32xf32>
    %21 = vector.shape_cast %20 : vector<32xf32> to vector<32x1xf32>
    %cst_3 = arith.constant 4.000000e+00 : f32
    %22 = vector.broadcast %cst_3 : f32 to vector<32x1xf32>
    %23 = arith.divf %21, %22 : vector<32x1xf32>
    %cst_4 = arith.constant 1.000000e+00 : f32
    %24 = vector.broadcast %cst_4 : f32 to vector<32x1xf32>
    %25 = arith.subf %23, %24 : vector<32x1xf32>
    %cst_5 = arith.constant 1.000000e+03 : f32
    %26 = vector.broadcast %cst_5 : f32 to vector<32x1xf32>
    %27 = arith.mulf %26, %25 : vector<32x1xf32>
    %cst_6 = arith.constant dense<0.000000e+00> : vector<32xf32>
    %28 = vector.multi_reduction <add>, %5, %cst_6 [1] : vector<32x4xf32> to vector<32xf32>
    %29 = vector.shape_cast %28 : vector<32xf32> to vector<32x1xf32>
    %cst_7 = arith.constant 4.000000e+00 : f32
    %30 = vector.broadcast %cst_7 : f32 to vector<32x1xf32>
    %31 = arith.divf %29, %30 : vector<32x1xf32>
    %cst_8 = arith.constant dense<0.000000e+00> : vector<32xf32>
    %32 = vector.multi_reduction <add>, %19, %cst_8 [1] : vector<32x4xf32> to vector<32xf32>
    %33 = vector.shape_cast %32 : vector<32xf32> to vector<32x1xf32>
    %cst_9 = arith.constant 4.000000e+00 : f32
    %34 = vector.broadcast %cst_9 : f32 to vector<32x1xf32>
    %35 = arith.divf %33, %34 : vector<32x1xf32>
    %36 = arith.divf %35, %31 : vector<32x1xf32>
    %cst_10 = arith.constant 1.000000e+00 : f32
    %37 = vector.broadcast %cst_10 : f32 to vector<32x1xf32>
    %38 = arith.subf %36, %37 : vector<32x1xf32>
    %cst_11 = arith.constant 1.000000e+03 : f32
    %39 = vector.broadcast %cst_11 : f32 to vector<32x1xf32>
    %40 = arith.mulf %39, %38 : vector<32x1xf32>
    %41 = tpu.iota {dimensions = array<i32: 1>} : vector<32x2xi32>
    %c0_i32 = arith.constant 0 : i32
    %42 = vector.broadcast %c0_i32 : i32 to vector<32x2xi32>
    %43 = arith.cmpi eq, %41, %42 : vector<32x2xi32>
    %44 = vector.shape_cast %27 : vector<32x1xf32> to vector<32x1xf32>
    %45 = vector.broadcast %44 : vector<32x1xf32> to vector<32x2xf32>
    %46 = vector.shape_cast %40 : vector<32x1xf32> to vector<32x1xf32>
    %47 = vector.broadcast %46 : vector<32x1xf32> to vector<32x2xf32>
    %48 = arith.select %43, %45, %47 : vector<32x2xi1>, vector<32x2xf32>
    %c0_12 = arith.constant 0 : index
    %c0_13 = arith.constant 0 : index
    %49 = vector.load %arg1[%c0_12, %c0_13] : memref<32x2xf32, #tpu.memory_space<vmem>>, vector<32x2xf32>
    tpu.vector_store %arg1[%c0_12, %c0_13], %48 {strides = array<i32>} : memref<32x2xf32, #tpu.memory_space<vmem>>, vector<32x2xf32>,
    %50 = tpu.iota {dimensions = array<i32: 1>} : vector<32x64xi32>
    %51 = tpu.iota {dimensions = array<i32: 0>} : vector<32x64xi32>
    %c32_i32 = arith.constant 32 : i32
    %52 = vector.broadcast %c32_i32 : i32 to vector<32x64xi32>
    %53 = arith.cmpi slt, %50, %52 : vector<32x64xi32>
    %54 = vector.shape_cast %27 : vector<32x1xf32> to vector<32x1xf32>
    %55 = vector.broadcast %54 : vector<32x1xf32> to vector<32x64xf32>
    %56 = vector.shape_cast %40 : vector<32x1xf32> to vector<32x1xf32>
    %57 = vector.broadcast %56 : vector<32x1xf32> to vector<32x64xf32>
    %58 = arith.select %53, %55, %57 : vector<32x64xi1>, vector<32x64xf32>
    %59 = arith.cmpi eq, %50, %51 : vector<32x64xi32>
    %c32_i32_14 = arith.constant 32 : i32
    %60 = vector.broadcast %c32_i32_14 : i32 to vector<32x64xi32>
    %61 = arith.addi %51, %60 : vector<32x64xi32>
    %62 = arith.cmpi eq, %50, %61 : vector<32x64xi32>
    %63 = arith.ori %59, %62 : vector<32x64xi1>
    %cst_15 = arith.constant 0.000000e+00 : f32
    %64 = vector.broadcast %cst_15 : f32 to vector<32x64xf32>
    %65 = arith.select %63, %58, %64 : vector<32x64xi1>, vector<32x64xf32>
    %cst_16 = arith.constant dense<0.000000e+00> : vector<64xf32>
    %66 = vector.multi_reduction <add>, %65, %cst_16 [0] : vector<32x64xf32> to vector<64xf32>
    %67 = vector.shape_cast %66 : vector<64xf32> to vector<1x64xf32>
    %68 = vector.broadcast %67 : vector<1x64xf32> to vector<32x64xf32>
    %69 = arith.subf %58, %68 : vector<32x64xf32>
    %70 = math.absf %69 : vector<32x64xf32>
    %cst_17 = arith.constant dense<0.000000e+00> : vector<64xf32>
    %71 = vector.multi_reduction <add>, %70, %cst_17 [0] : vector<32x64xf32> to vector<64xf32>
    %72 = vector.shape_cast %71 : vector<64xf32> to vector<1x64xf32>
    %73 = tpu.iota {dimensions = array<i32: 0>} : vector<32x1xi32>
    %74 = arith.sitofp %73 : vector<32x1xi32> to vector<32x1xf32>
    %cst_18 = arith.constant 2.000000e+00 : f32
    %75 = vector.broadcast %cst_18 : f32 to vector<32x1xf32>
    %76 = arith.mulf %75, %74 : vector<32x1xf32>
    %cst_19 = arith.constant 3.100000e+01 : f32
    %77 = vector.broadcast %cst_19 : f32 to vector<32x1xf32>
    %78 = arith.subf %77, %76 : vector<32x1xf32>
    %79 = vector.broadcast %67 : vector<1x64xf32> to vector<32x64xf32>
    %80 = vector.broadcast %78 : vector<32x1xf32> to vector<32x64xf32>
    %81 = arith.mulf %79, %80 : vector<32x64xf32>
    %82 = vector.broadcast %72 : vector<1x64xf32> to vector<32x64xf32>
    %83 = arith.subf %81, %82 : vector<32x64xf32>
    %cst_20 = arith.constant 1.000000e+01 : f32
    %84 = vector.broadcast %cst_20 : f32 to vector<32x64xf32>
    %85 = arith.mulf %83, %84 : vector<32x64xf32>
    %cst_21 = arith.constant -1.000000e+30 : f32
    %86 = vector.broadcast %cst_21 : f32 to vector<32x64xf32>
    %87 = arith.select %53, %85, %86 : vector<32x64xi1>, vector<32x64xf32>
    %cst_22 = arith.constant dense<0xFF800000> : vector<32xf32>
    %88 = vector.multi_reduction <maximumf>, %87, %cst_22 [1] : vector<32x64xf32> to vector<32xf32>
    %89 = vector.shape_cast %88 : vector<32xf32> to vector<32x1xf32>
    %cst_23 = arith.constant -1.000000e+30 : f32
    %90 = vector.broadcast %cst_23 : f32 to vector<32x64xf32>
    %91 = arith.select %53, %90, %85 : vector<32x64xi1>, vector<32x64xf32>
    %cst_24 = arith.constant dense<0xFF800000> : vector<32xf32>
    %92 = vector.multi_reduction <maximumf>, %91, %cst_24 [1] : vector<32x64xf32> to vector<32xf32>
    %93 = vector.shape_cast %92 : vector<32xf32> to vector<32x1xf32>
    %94 = vector.shape_cast %89 : vector<32x1xf32> to vector<32x1xf32>
    %95 = vector.broadcast %94 : vector<32x1xf32> to vector<32x64xf32>
    %96 = vector.shape_cast %93 : vector<32x1xf32> to vector<32x1xf32>
    %97 = vector.broadcast %96 : vector<32x1xf32> to vector<32x64xf32>
    %98 = arith.select %53, %95, %97 : vector<32x64xi1>, vector<32x64xf32>
    %99 = arith.subf %85, %98 : vector<32x64xf32>
    %100 = math.exp %99 : vector<32x64xf32>
    %cst_25 = arith.constant 0.000000e+00 : f32
    %101 = vector.broadcast %cst_25 : f32 to vector<32x64xf32>
    %102 = arith.select %53, %100, %101 : vector<32x64xi1>, vector<32x64xf32>
    %cst_26 = arith.constant dense<0.000000e+00> : vector<32xf32>
    %103 = vector.multi_reduction <add>, %102, %cst_26 [1] : vector<32x64xf32> to vector<32xf32>
    %104 = vector.shape_cast %103 : vector<32xf32> to vector<32x1xf32>
    %cst_27 = arith.constant dense<0.000000e+00> : vector<32xf32>
    %105 = vector.multi_reduction <add>, %100, %cst_27 [1] : vector<32x64xf32> to vector<32xf32>
    %106 = vector.shape_cast %105 : vector<32xf32> to vector<32x1xf32>
    %107 = arith.subf %106, %104 : vector<32x1xf32>
    %108 = vector.broadcast %67 : vector<1x64xf32> to vector<32x64xf32>
    %109 = arith.mulf %100, %108 : vector<32x64xf32>
    %cst_28 = arith.constant 0.000000e+00 : f32
    %110 = vector.broadcast %cst_28 : f32 to vector<32x64xf32>
    %111 = arith.select %53, %109, %110 : vector<32x64xi1>, vector<32x64xf32>
    %cst_29 = arith.constant dense<0.000000e+00> : vector<32xf32>
    %112 = vector.multi_reduction <add>, %111, %cst_29 [1] : vector<32x64xf32> to vector<32xf32>
    %113 = vector.shape_cast %112 : vector<32xf32> to vector<32x1xf32>
    %cst_30 = arith.constant dense<0.000000e+00> : vector<32xf32>
    %114 = vector.multi_reduction <add>, %109, %cst_30 [1] : vector<32x64xf32> to vector<32xf32>
    %115 = vector.shape_cast %114 : vector<32xf32> to vector<32x1xf32>
    %116 = arith.subf %115, %113 : vector<32x1xf32>
    %117 = tpu.reciprocal %104 {approx = true} : vector<32x1xf32> -> vector<32x1xf32>
    %118 = arith.mulf %113, %117 : vector<32x1xf32>
    %119 = tpu.reciprocal %107 {approx = true} : vector<32x1xf32> -> vector<32x1xf32>
    %120 = arith.mulf %116, %119 : vector<32x1xf32>
    %121 = tpu.iota {dimensions = array<i32: 0>} : vector<2x4xi32>
    %122 = tpu.iota {dimensions = array<i32: 1>} : vector<2x4xi32>
    %cst_31 = arith.constant 0.000000e+00 : f32
    %123 = vector.broadcast %cst_31 : f32 to vector<2x4xf32>
    %c31_i32 = arith.constant 31 : i32
    %124 = vector.broadcast %c31_i32 : i32 to vector<32x1xi32>
    %125 = arith.cmpi eq, %73, %124 : vector<32x1xi32>
    %cst_32 = arith.constant 0.000000e+00 : f32
    %126 = vector.broadcast %cst_32 : f32 to vector<32x1xf32>
    %127 = arith.select %125, %118, %126 : vector<32x1xi1>, vector<32x1xf32>
    %cst_33 = arith.constant dense<0.000000e+00> : vector<1xf32>
    %128 = vector.multi_reduction <add>, %127, %cst_33 [0] : vector<32x1xf32> to vector<1xf32>
    %129 = vector.shape_cast %128 : vector<1xf32> to vector<1x1xf32>
    %cst_34 = arith.constant 2.000000e+00 : f32
    %130 = vector.broadcast %cst_34 : f32 to vector<1x1xf32>
    %131 = arith.mulf %130, %129 : vector<1x1xf32>
    %132 = arith.cmpf olt, %131, %129 : vector<1x1xf32>
    %cst_35 = arith.constant 2.000000e+00 : f32
    %133 = vector.broadcast %cst_35 : f32 to vector<1x1xf32>
    %134 = arith.mulf %133, %129 : vector<1x1xf32>
    %135 = arith.addf %129, %134 : vector<1x1xf32>
    %cst_36 = arith.constant 2.000000e-01 : f32
    %136 = vector.broadcast %cst_36 : f32 to vector<1x1xf32>
    %137 = arith.mulf %135, %136 : vector<1x1xf32>
    %138 = arith.select %132, %129, %137 : vector<1x1xi1>, vector<1x1xf32>
    %cst_37 = arith.constant 1.000000e+00 : f32
    %139 = vector.broadcast %cst_37 : f32 to vector<1x1xf32>
    %140 = arith.mulf %139, %138 : vector<1x1xf32>
    %cst_38 = arith.constant 2.000000e+00 : f32
    %141 = vector.broadcast %cst_38 : f32 to vector<1x1xf32>
    %142 = arith.mulf %141, %137 : vector<1x1xf32>
    %143 = arith.select %132, %129, %142 : vector<1x1xi1>, vector<1x1xf32>
    %cst_39 = arith.constant 1.000000e+00 : f32
    %144 = vector.broadcast %cst_39 : f32 to vector<1x1xf32>
    %145 = arith.mulf %144, %143 : vector<1x1xf32>
    %c0_i32_40 = arith.constant 0 : i32
    %146 = vector.broadcast %c0_i32_40 : i32 to vector<2x4xi32>
    %147 = arith.cmpi eq, %121, %146 : vector<2x4xi32>
    %c0_i32_41 = arith.constant 0 : i32
    %148 = vector.broadcast %c0_i32_41 : i32 to vector<2x4xi32>
    %149 = arith.cmpi eq, %122, %148 : vector<2x4xi32>
    %150 = arith.andi %147, %149 : vector<2x4xi1>
    %151 = vector.shape_cast %140 : vector<1x1xf32> to vector<1x1xf32>
    %152 = vector.broadcast %151 : vector<1x1xf32> to vector<2x4xf32>
    %153 = arith.select %150, %152, %123 : vector<2x4xi1>, vector<2x4xf32>
    %c0_i32_42 = arith.constant 0 : i32
    %154 = vector.broadcast %c0_i32_42 : i32 to vector<2x4xi32>
    %155 = arith.cmpi eq, %121, %154 : vector<2x4xi32>
    %c1_i32 = arith.constant 1 : i32
    %156 = vector.broadcast %c1_i32 : i32 to vector<2x4xi32>
    %157 = arith.cmpi eq, %122, %156 : vector<2x4xi32>
    %158 = arith.andi %155, %157 : vector<2x4xi1>
    %159 = vector.shape_cast %145 : vector<1x1xf32> to vector<1x1xf32>
    %160 = vector.broadcast %159 : vector<1x1xf32> to vector<2x4xf32>
    %161 = arith.select %158, %160, %153 : vector<2x4xi1>, vector<2x4xf32>
    %c29_i32 = arith.constant 29 : i32
    %162 = vector.broadcast %c29_i32 : i32 to vector<32x1xi32>
    %163 = arith.cmpi eq, %73, %162 : vector<32x1xi32>
    %cst_43 = arith.constant 0.000000e+00 : f32
    %164 = vector.broadcast %cst_43 : f32 to vector<32x1xf32>
    %165 = arith.select %163, %118, %164 : vector<32x1xi1>, vector<32x1xf32>
    %cst_44 = arith.constant dense<0.000000e+00> : vector<1xf32>
    %166 = vector.multi_reduction <add>, %165, %cst_44 [0] : vector<32x1xf32> to vector<1xf32>
    %167 = vector.shape_cast %166 : vector<1xf32> to vector<1x1xf32>
    %c29_i32_45 = arith.constant 29 : i32
    %168 = vector.broadcast %c29_i32_45 : i32 to vector<32x1xi32>
    %169 = arith.cmpi sge, %73, %168 : vector<32x1xi32>
    %cst_46 = arith.constant 0.000000e+00 : f32
    %170 = vector.broadcast %cst_46 : f32 to vector<32x1xf32>
    %171 = arith.select %169, %118, %170 : vector<32x1xi1>, vector<32x1xf32>
    %cst_47 = arith.constant dense<0.000000e+00> : vector<1xf32>
    %172 = vector.multi_reduction <add>, %171, %cst_47 [0] : vector<32x1xf32> to vector<1xf32>
    %173 = vector.shape_cast %172 : vector<1xf32> to vector<1x1xf32>
    %cst_48 = arith.constant 0.333333343 : f32
    %174 = vector.broadcast %cst_48 : f32 to vector<1x1xf32>
    %175 = arith.mulf %173, %174 : vector<1x1xf32>
    %cst_49 = arith.constant 2.000000e+00 : f32
    %176 = vector.broadcast %cst_49 : f32 to vector<1x1xf32>
    %177 = arith.mulf %176, %167 : vector<1x1xf32>
    %178 = arith.cmpf olt, %177, %175 : vector<1x1xf32>
    %cst_50 = arith.constant 2.000000e+00 : f32
    %179 = vector.broadcast %cst_50 : f32 to vector<1x1xf32>
    %180 = arith.mulf %179, %175 : vector<1x1xf32>
    %181 = arith.addf %167, %180 : vector<1x1xf32>
    %cst_51 = arith.constant 2.000000e-01 : f32
    %182 = vector.broadcast %cst_51 : f32 to vector<1x1xf32>
    %183 = arith.mulf %181, %182 : vector<1x1xf32>
    %184 = arith.select %178, %167, %183 : vector<1x1xi1>, vector<1x1xf32>
    %cst_52 = arith.constant 1.000000e+00 : f32
    %185 = vector.broadcast %cst_52 : f32 to vector<1x1xf32>
    %186 = arith.mulf %185, %184 : vector<1x1xf32>
    %cst_53 = arith.constant 2.000000e+00 : f32
    %187 = vector.broadcast %cst_53 : f32 to vector<1x1xf32>
    %188 = arith.mulf %187, %183 : vector<1x1xf32>
    %189 = arith.select %178, %175, %188 : vector<1x1xi1>, vector<1x1xf32>
    %cst_54 = arith.constant 1.000000e+00 : f32
    %190 = vector.broadcast %cst_54 : f32 to vector<1x1xf32>
    %191 = arith.mulf %190, %189 : vector<1x1xf32>
    %c0_i32_55 = arith.constant 0 : i32
    %192 = vector.broadcast %c0_i32_55 : i32 to vector<2x4xi32>
    %193 = arith.cmpi eq, %121, %192 : vector<2x4xi32>
    %c2_i32 = arith.constant 2 : i32
    %194 = vector.broadcast %c2_i32 : i32 to vector<2x4xi32>
    %195 = arith.cmpi eq, %122, %194 : vector<2x4xi32>
    %196 = arith.andi %193, %195 : vector<2x4xi1>
    %197 = vector.shape_cast %186 : vector<1x1xf32> to vector<1x1xf32>
    %198 = vector.broadcast %197 : vector<1x1xf32> to vector<2x4xf32>
    %199 = arith.select %196, %198, %161 : vector<2x4xi1>, vector<2x4xf32>
    %c0_i32_56 = arith.constant 0 : i32
    %200 = vector.broadcast %c0_i32_56 : i32 to vector<2x4xi32>
    %201 = arith.cmpi eq, %121, %200 : vector<2x4xi32>
    %c3_i32 = arith.constant 3 : i32
    %202 = vector.broadcast %c3_i32 : i32 to vector<2x4xi32>
    %203 = arith.cmpi eq, %122, %202 : vector<2x4xi32>
    %204 = arith.andi %201, %203 : vector<2x4xi1>
    %205 = vector.shape_cast %191 : vector<1x1xf32> to vector<1x1xf32>
    %206 = vector.broadcast %205 : vector<1x1xf32> to vector<2x4xf32>
    %207 = arith.select %204, %206, %199 : vector<2x4xi1>, vector<2x4xf32>
    %c31_i32_57 = arith.constant 31 : i32
    %208 = vector.broadcast %c31_i32_57 : i32 to vector<32x1xi32>
    %209 = arith.cmpi eq, %73, %208 : vector<32x1xi32>
    %cst_58 = arith.constant 0.000000e+00 : f32
    %210 = vector.broadcast %cst_58 : f32 to vector<32x1xf32>
    %211 = arith.select %209, %120, %210 : vector<32x1xi1>, vector<32x1xf32>
    %cst_59 = arith.constant dense<0.000000e+00> : vector<1xf32>
    %212 = vector.multi_reduction <add>, %211, %cst_59 [0] : vector<32x1xf32> to vector<1xf32>
    %213 = vector.shape_cast %212 : vector<1xf32> to vector<1x1xf32>
    %cst_60 = arith.constant 2.000000e+00 : f32
    %214 = vector.broadcast %cst_60 : f32 to vector<1x1xf32>
    %215 = arith.mulf %214, %213 : vector<1x1xf32>
    %216 = arith.cmpf olt, %215, %213 : vector<1x1xf32>
    %cst_61 = arith.constant 2.000000e+00 : f32
    %217 = vector.broadcast %cst_61 : f32 to vector<1x1xf32>
    %218 = arith.mulf %217, %213 : vector<1x1xf32>
    %219 = arith.addf %213, %218 : vector<1x1xf32>
    %cst_62 = arith.constant 2.000000e-01 : f32
    %220 = vector.broadcast %cst_62 : f32 to vector<1x1xf32>
    %221 = arith.mulf %219, %220 : vector<1x1xf32>
    %222 = arith.select %216, %213, %221 : vector<1x1xi1>, vector<1x1xf32>
    %cst_63 = arith.constant 1.000000e+00 : f32
    %223 = vector.broadcast %cst_63 : f32 to vector<1x1xf32>
    %224 = arith.mulf %223, %222 : vector<1x1xf32>
    %cst_64 = arith.constant 2.000000e+00 : f32
    %225 = vector.broadcast %cst_64 : f32 to vector<1x1xf32>
    %226 = arith.mulf %225, %221 : vector<1x1xf32>
    %227 = arith.select %216, %213, %226 : vector<1x1xi1>, vector<1x1xf32>
    %cst_65 = arith.constant 1.000000e+00 : f32
    %228 = vector.broadcast %cst_65 : f32 to vector<1x1xf32>
    %229 = arith.mulf %228, %227 : vector<1x1xf32>
    %c1_i32_66 = arith.constant 1 : i32
    %230 = vector.broadcast %c1_i32_66 : i32 to vector<2x4xi32>
    %231 = arith.cmpi eq, %121, %230 : vector<2x4xi32>
    %c0_i32_67 = arith.constant 0 : i32
    %232 = vector.broadcast %c0_i32_67 : i32 to vector<2x4xi32>
    %233 = arith.cmpi eq, %122, %232 : vector<2x4xi32>
    %234 = arith.andi %231, %233 : vector<2x4xi1>
    %235 = vector.shape_cast %224 : vector<1x1xf32> to vector<1x1xf32>
    %236 = vector.broadcast %235 : vector<1x1xf32> to vector<2x4xf32>
    %237 = arith.select %234, %236, %207 : vector<2x4xi1>, vector<2x4xf32>
    %c1_i32_68 = arith.constant 1 : i32
    %238 = vector.broadcast %c1_i32_68 : i32 to vector<2x4xi32>
    %239 = arith.cmpi eq, %121, %238 : vector<2x4xi32>
    %c1_i32_69 = arith.constant 1 : i32
    %240 = vector.broadcast %c1_i32_69 : i32 to vector<2x4xi32>
    %241 = arith.cmpi eq, %122, %240 : vector<2x4xi32>
    %242 = arith.andi %239, %241 : vector<2x4xi1>
    %243 = vector.shape_cast %229 : vector<1x1xf32> to vector<1x1xf32>
    %244 = vector.broadcast %243 : vector<1x1xf32> to vector<2x4xf32>
    %245 = arith.select %242, %244, %237 : vector<2x4xi1>, vector<2x4xf32>
    %c29_i32_70 = arith.constant 29 : i32
    %246 = vector.broadcast %c29_i32_70 : i32 to vector<32x1xi32>
    %247 = arith.cmpi eq, %73, %246 : vector<32x1xi32>
    %cst_71 = arith.constant 0.000000e+00 : f32
    %248 = vector.broadcast %cst_71 : f32 to vector<32x1xf32>
    %249 = arith.select %247, %120, %248 : vector<32x1xi1>, vector<32x1xf32>
    %cst_72 = arith.constant dense<0.000000e+00> : vector<1xf32>
    %250 = vector.multi_reduction <add>, %249, %cst_72 [0] : vector<32x1xf32> to vector<1xf32>
    %251 = vector.shape_cast %250 : vector<1xf32> to vector<1x1xf32>
    %c29_i32_73 = arith.constant 29 : i32
    %252 = vector.broadcast %c29_i32_73 : i32 to vector<32x1xi32>
    %253 = arith.cmpi sge, %73, %252 : vector<32x1xi32>
    %cst_74 = arith.constant 0.000000e+00 : f32
    %254 = vector.broadcast %cst_74 : f32 to vector<32x1xf32>
    %255 = arith.select %253, %120, %254 : vector<32x1xi1>, vector<32x1xf32>
    %cst_75 = arith.constant dense<0.000000e+00> : vector<1xf32>
    %256 = vector.multi_reduction <add>, %255, %cst_75 [0] : vector<32x1xf32> to vector<1xf32>
    %257 = vector.shape_cast %256 : vector<1xf32> to vector<1x1xf32>
    %cst_76 = arith.constant 0.333333343 : f32
    %258 = vector.broadcast %cst_76 : f32 to vector<1x1xf32>
    %259 = arith.mulf %257, %258 : vector<1x1xf32>
    %cst_77 = arith.constant 2.000000e+00 : f32
    %260 = vector.broadcast %cst_77 : f32 to vector<1x1xf32>
    %261 = arith.mulf %260, %251 : vector<1x1xf32>
    %262 = arith.cmpf olt, %261, %259 : vector<1x1xf32>
    %cst_78 = arith.constant 2.000000e+00 : f32
    %263 = vector.broadcast %cst_78 : f32 to vector<1x1xf32>
    %264 = arith.mulf %263, %259 : vector<1x1xf32>
    %265 = arith.addf %251, %264 : vector<1x1xf32>
    %cst_79 = arith.constant 2.000000e-01 : f32
    %266 = vector.broadcast %cst_79 : f32 to vector<1x1xf32>
    %267 = arith.mulf %265, %266 : vector<1x1xf32>
    %268 = arith.select %262, %251, %267 : vector<1x1xi1>, vector<1x1xf32>
    %cst_80 = arith.constant 1.000000e+00 : f32
    %269 = vector.broadcast %cst_80 : f32 to vector<1x1xf32>
    %270 = arith.mulf %269, %268 : vector<1x1xf32>
    %cst_81 = arith.constant 2.000000e+00 : f32
    %271 = vector.broadcast %cst_81 : f32 to vector<1x1xf32>
    %272 = arith.mulf %271, %267 : vector<1x1xf32>
    %273 = arith.select %262, %259, %272 : vector<1x1xi1>, vector<1x1xf32>
    %cst_82 = arith.constant 1.000000e+00 : f32
    %274 = vector.broadcast %cst_82 : f32 to vector<1x1xf32>
    %275 = arith.mulf %274, %273 : vector<1x1xf32>
    %c1_i32_83 = arith.constant 1 : i32
    %276 = vector.broadcast %c1_i32_83 : i32 to vector<2x4xi32>
    %277 = arith.cmpi eq, %121, %276 : vector<2x4xi32>
    %c2_i32_84 = arith.constant 2 : i32
    %278 = vector.broadcast %c2_i32_84 : i32 to vector<2x4xi32>
    %279 = arith.cmpi eq, %122, %278 : vector<2x4xi32>
    %280 = arith.andi %277, %279 : vector<2x4xi1>
    %281 = vector.shape_cast %270 : vector<1x1xf32> to vector<1x1xf32>
    %282 = vector.broadcast %281 : vector<1x1xf32> to vector<2x4xf32>
    %283 = arith.select %280, %282, %245 : vector<2x4xi1>, vector<2x4xf32>
    %c1_i32_85 = arith.constant 1 : i32
    %284 = vector.broadcast %c1_i32_85 : i32 to vector<2x4xi32>
    %285 = arith.cmpi eq, %121, %284 : vector<2x4xi32>
    %c3_i32_86 = arith.constant 3 : i32
    %286 = vector.broadcast %c3_i32_86 : i32 to vector<2x4xi32>
    %287 = arith.cmpi eq, %122, %286 : vector<2x4xi32>
    %288 = arith.andi %285, %287 : vector<2x4xi1>
    %289 = vector.shape_cast %275 : vector<1x1xf32> to vector<1x1xf32>
    %290 = vector.broadcast %289 : vector<1x1xf32> to vector<2x4xf32>
    %291 = arith.select %288, %290, %283 : vector<2x4xi1>, vector<2x4xf32>
    %c0_87 = arith.constant 0 : index
    %c0_88 = arith.constant 0 : index
    %292 = vector.load %arg2[%c0_87, %c0_88] : memref<2x4xf32, #tpu.memory_space<vmem>>, vector<2x4xf32>
    tpu.vector_store %arg2[%c0_87, %c0_88], %291 {strides = array<i32>} : memref<2x4xf32, #tpu.memory_space<vmem>>, vector<2x4xf32>,
    return
  }
}

</mosaic_0001>

<llo_original>
// kernel: discriminator_forward.1
$region0: #{discriminator_forward.1}
  #allocation0 [shape = 'u32[]', space=smem, size = 0x4, offset = 0x4, fixed_abs, tag = 'smem constant byte address 0x4 - core index']
  #allocation1 [shape = 'u32[72,128]{1,0:T(1,128)}', space=vmem, size = 0x9000, scoped, tag = 'internal scratch']
  %s0 = inlined_call_operand.vmem [shape: f32[32,32], index: 0, kind: input, shape index: {}]
  %s1 = inlined_call_operand.vmem [shape: f32[32,2], index: 1, kind: output, shape index: {0}]
  %s2 = inlined_call_operand.hbm [shape: f32[2,4], index: 2, kind: output, shape index: {1}]
  %3 = xla_tuple %s1, %s2
  %s4 = sld [smem:[#allocation0]]
  $region22: #{discriminator_forward.1} parent=0
    _
  %s6 = ssub.s32 1, %s4
  %s7 = scalar_select 0, %s6, %s4
  $region1: #{discriminator_forward.1} parent=0
    #allocation2 [shape = 'u8[1024]{0}', space=vmem, size = 0x400, scoped, tag = 'output window, operand 1, single buffered']
    #allocation3 [shape = 's32[1]{0}', space=sflag, size = 0x4, scoped, tag = 'scoped memory for discriminator_forward.1']
    %8 = vsyncpa [#allocation3], 0
    // Predicated region
    $region2: #{discriminator_forward.1} parent=1 // pred_check
      _
    $region3: #{discriminator_forward.1} parent=1 // pred_check_branch
      %10 = sbr.rel (0) target = $region5
    $region4: #{discriminator_forward.1} parent=1 // pred_region
      _
    $region5: #{discriminator_forward.1} parent=1 // pred_fallthru
      _
    %v11 = vld [vmem:[%s0] sm:$0xff]
    %v12 = vld [vmem:[%s0 + $0x8] sm:$0xff]
    %v13 = vld [vmem:[%s0 + $0x10] sm:$0xff]
    %v14 = vld [vmem:[%s0 + $0x18] sm:$0xff]
    %v15 = vadd.f32 %v11, 1.0
    %v16 = vadd.f32 %v12, 1.0
    %v17 = vadd.f32 %v13, 1.0
    %v18 = vadd.f32 %v14, 1.0
    %v19 = vmul.f32 %v15, 100.0
    %v20 = vmul.f32 %v16, 100.0
    %v21 = vmul.f32 %v17, 100.0
    %v22 = vmul.f32 %v18, 100.0
    %27 = vrot.lane.b32.xlu0 %v15, 124
    %v28 = vpop.permute.xlu0 %27
    %29 = vrot.lane.b32.xlu0 %v16, 124
    %v30 = vpop.permute.xlu0 %29
    %31 = vrot.lane.b32.xlu0 %v17, 124
    %v32 = vpop.permute.xlu0 %31
    %33 = vrot.lane.b32.xlu0 %v18, 124
    %v34 = vpop.permute.xlu0 %33
    %v39 = vmul.f32 %v15, %v28
    %v40 = vmul.f32 %v16, %v30
    %v41 = vmul.f32 %v17, %v32
    %v42 = vmul.f32 %v18, %v34
    %43 = vrot.lane.b32.xlu0 %v15, 120
    %v44 = vpop.permute.xlu0 %43
    %45 = vrot.lane.b32.xlu0 %v16, 120
    %v46 = vpop.permute.xlu0 %45
    %47 = vrot.lane.b32.xlu0 %v17, 120
    %v48 = vpop.permute.xlu0 %47
    %49 = vrot.lane.b32.xlu0 %v18, 120
    %v50 = vpop.permute.xlu0 %49
    %v55 = vmul.f32 %v39, %v44
    %v56 = vmul.f32 %v40, %v46
    %v57 = vmul.f32 %v41, %v48
    %v58 = vmul.f32 %v42, %v50
    %59 = vrot.lane.b32.xlu0 %v15, 116
    %v60 = vpop.permute.xlu0 %59
    %61 = vrot.lane.b32.xlu0 %v16, 116
    %v62 = vpop.permute.xlu0 %61
    %63 = vrot.lane.b32.xlu0 %v17, 116
    %v64 = vpop.permute.xlu0 %63
    %65 = vrot.lane.b32.xlu0 %v18, 116
    %v66 = vpop.permute.xlu0 %65
    %v71 = vmul.f32 %v55, %v60
    %v72 = vmul.f32 %v56, %v62
    %v73 = vmul.f32 %v57, %v64
    %v74 = vmul.f32 %v58, %v66
    %75 = vrot.lane.b32.xlu0 %v15, 112
    %v76 = vpop.permute.xlu0 %75
    %77 = vrot.lane.b32.xlu0 %v16, 112
    %v78 = vpop.permute.xlu0 %77
    %79 = vrot.lane.b32.xlu0 %v17, 112
    %v80 = vpop.permute.xlu0 %79
    %81 = vrot.lane.b32.xlu0 %v18, 112
    %v82 = vpop.permute.xlu0 %81
    %v87 = vmul.f32 %v71, %v76
    %v88 = vmul.f32 %v72, %v78
    %v89 = vmul.f32 %v73, %v80
    %v90 = vmul.f32 %v74, %v82
    %91 = vrot.lane.b32.xlu0 %v15, 108
    %v92 = vpop.permute.xlu0 %91
    %93 = vrot.lane.b32.xlu0 %v16, 108
    %v94 = vpop.permute.xlu0 %93
    %95 = vrot.lane.b32.xlu0 %v17, 108
    %v96 = vpop.permute.xlu0 %95
    %97 = vrot.lane.b32.xlu0 %v18, 108
    %v98 = vpop.permute.xlu0 %97
    %v103 = vmul.f32 %v87, %v92
    %v104 = vmul.f32 %v88, %v94
    %v105 = vmul.f32 %v89, %v96
    %v106 = vmul.f32 %v90, %v98
    %107 = vrot.lane.b32.xlu0 %v15, 104
    %v108 = vpop.permute.xlu0 %107
    %109 = vrot.lane.b32.xlu0 %v16, 104
    %v110 = vpop.permute.xlu0 %109
    %111 = vrot.lane.b32.xlu0 %v17, 104
    %v112 = vpop.permute.xlu0 %111
    %113 = vrot.lane.b32.xlu0 %v18, 104
    %v114 = vpop.permute.xlu0 %113
    %v119 = vmul.f32 %v103, %v108
    %v120 = vmul.f32 %v104, %v110
    %v121 = vmul.f32 %v105, %v112
    %v122 = vmul.f32 %v106, %v114
    %127 = vrot.lane.b32.xlu0 %v119, 124
    %v128 = vpop.permute.xlu0 %127
    %129 = vrot.lane.b32.xlu0 %v120, 124
    %v130 = vpop.permute.xlu0 %129
    %131 = vrot.lane.b32.xlu0 %v121, 124
    %v132 = vpop.permute.xlu0 %131
    %133 = vrot.lane.b32.xlu0 %v122, 124
    %v134 = vpop.permute.xlu0 %133
    %v139 = vmul.f32 %v19, %v128
    %v140 = vmul.f32 %v20, %v130
    %v141 = vmul.f32 %v21, %v132
    %v142 = vmul.f32 %v22, %v134
    %vm143 = vcmask 31744
    %v144 = vsel %vm143, %v128, 0.0
    %145 = vadd.xlane.f32.xlu0 %v144
    %v146 = vpop.xlane.xlu0 %145
    %v147 = vsel %vm143, %v130, 0.0
    %148 = vadd.xlane.f32.xlu0 %v147
    %v149 = vpop.xlane.xlu0 %148
    %v150 = vsel %vm143, %v132, 0.0
    %151 = vadd.xlane.f32.xlu0 %v150
    %v152 = vpop.xlane.xlu0 %151
    %v153 = vsel %vm143, %v134, 0.0
    %154 = vadd.xlane.f32.xlu0 %v153
    %v155 = vpop.xlane.xlu0 %154
    %v156 = vrcp.pop 4.0
    %v157 = vmul.f32 4.0, %v156
    %v158 = vsub.f32 1.0, %v157
    %v159 = vmul.f32 %v156, %v158
    %v160 = vadd.f32 %v156, %v159
    %vm161 = vweird.f32 %v156
    %v162 = vsel %vm161, %v156, %v160
    %v163 = vmul.f32 %v146, %v162
    %v164 = vmul.f32 %v149, %v162
    %v165 = vmul.f32 %v152, %v162
    %v166 = vmul.f32 %v155, %v162
    %v167 = vsub.f32 %v163, 1.0
    %v168 = vsub.f32 %v164, 1.0
    %v169 = vsub.f32 %v165, 1.0
    %v170 = vsub.f32 %v166, 1.0
    %v171 = vmul.f32 %v167, 1000.0
    %v172 = vmul.f32 %v168, 1000.0
    %v173 = vmul.f32 %v169, 1000.0
    %v174 = vmul.f32 %v170, 1000.0
    %v175 = vsel %vm143, %v19, 0.0
    %176 = vadd.xlane.f32.xlu0 %v175
    %v177 = vpop.xlane.xlu0 %176
    %v178 = vsel %vm143, %v20, 0.0
    %179 = vadd.xlane.f32.xlu0 %v178
    %v180 = vpop.xlane.xlu0 %179
    %v181 = vsel %vm143, %v21, 0.0
    %182 = vadd.xlane.f32.xlu0 %v181
    %v183 = vpop.xlane.xlu0 %182
    %v184 = vsel %vm143, %v22, 0.0
    %185 = vadd.xlane.f32.xlu0 %v184
    %v186 = vpop.xlane.xlu0 %185
    %v187 = vmul.f32 %v177, %v162
    %v188 = vmul.f32 %v180, %v162
    %v189 = vmul.f32 %v183, %v162
    %v190 = vmul.f32 %v186, %v162
    %v191 = vsel %vm143, %v139, 0.0
    %192 = vadd.xlane.f32.xlu0 %v191
    %v193 = vpop.xlane.xlu0 %192
    %v194 = vsel %vm143, %v140, 0.0
    %195 = vadd.xlane.f32.xlu0 %v194
    %v196 = vpop.xlane.xlu0 %195
    %v197 = vsel %vm143, %v141, 0.0
    %198 = vadd.xlane.f32.xlu0 %v197
    %v199 = vpop.xlane.xlu0 %198
    %v200 = vsel %vm143, %v142, 0.0
    %201 = vadd.xlane.f32.xlu0 %v200
    %v202 = vpop.xlane.xlu0 %201
    %v203 = vmul.f32 %v193, %v162
    %v204 = vmul.f32 %v196, %v162
    %v205 = vmul.f32 %v199, %v162
    %v206 = vmul.f32 %v202, %v162
    %v207 = vrcp.pop %v187
    %v208 = vmul.f32 %v187, %v207
    %v209 = vsub.f32 1.0, %v208
    %v210 = vmul.f32 %v207, %v209
    %v211 = vadd.f32 %v207, %v210
    %vm212 = vweird.f32 %v187
    %vm213 = vweird.f32 %v207
    %vm214 = vmor %vm212, %vm213
    %v215 = vsel %vm214, %v207, %v211
    %v216 = vand.u32 2147483647, %v187
    %vm217 = vcmp.eq.f32.partialorder %v216, 8.507059e+37
    %v218 = vand.u32 %v187, 2147483648
    %v219 = vor.u32 1.1754944e-38, %v218
    %v220 = vsel %vm217, %v219, %v215
    %v221 = vmul.f32 %v203, %v220
    %v222 = vrcp.pop %v188
    %v223 = vmul.f32 %v188, %v222
    %v224 = vsub.f32 1.0, %v223
    %v225 = vmul.f32 %v222, %v224
    %v226 = vadd.f32 %v222, %v225
    %vm227 = vweird.f32 %v188
    %vm228 = vweird.f32 %v222
    %vm229 = vmor %vm227, %vm228
    %v230 = vsel %vm229, %v222, %v226
    %v231 = vand.u32 2147483647, %v188
    %vm232 = vcmp.eq.f32.partialorder %v231, 8.507059e+37
    %v233 = vand.u32 %v188, 2147483648
    %v234 = vor.u32 1.1754944e-38, %v233
    %v235 = vsel %vm232, %v234, %v230
    %v236 = vmul.f32 %v204, %v235
    %v237 = vrcp.pop %v189
    %v238 = vmul.f32 %v189, %v237
    %v239 = vsub.f32 1.0, %v238
    %v240 = vmul.f32 %v237, %v239
    %v241 = vadd.f32 %v237, %v240
    %vm242 = vweird.f32 %v189
    %vm243 = vweird.f32 %v237
    %vm244 = vmor %vm242, %vm243
    %v245 = vsel %vm244, %v237, %v241
    %v246 = vand.u32 2147483647, %v189
    %vm247 = vcmp.eq.f32.partialorder %v246, 8.507059e+37
    %v248 = vand.u32 %v189, 2147483648
    %v249 = vor.u32 1.1754944e-38, %v248
    %v250 = vsel %vm247, %v249, %v245
    %v251 = vmul.f32 %v205, %v250
    %v252 = vrcp.pop %v190
    %v253 = vmul.f32 %v190, %v252
    %v254 = vsub.f32 1.0, %v253
    %v255 = vmul.f32 %v252, %v254
    %v256 = vadd.f32 %v252, %v255
    %vm257 = vweird.f32 %v190
    %vm258 = vweird.f32 %v252
    %vm259 = vmor %vm257, %vm258
    %v260 = vsel %vm259, %v252, %v256
    %v261 = vand.u32 2147483647, %v190
    %vm262 = vcmp.eq.f32.partialorder %v261, 8.507059e+37
    %v263 = vand.u32 %v190, 2147483648
    %v264 = vor.u32 1.1754944e-38, %v263
    %v265 = vsel %vm262, %v264, %v260
    %v266 = vmul.f32 %v206, %v265
    %v267 = vsub.f32 %v221, 1.0
    %v268 = vsub.f32 %v236, 1.0
    %v269 = vsub.f32 %v251, 1.0
    %v270 = vsub.f32 %v266, 1.0
    %v271 = vmul.f32 %v267, 1000.0
    %v272 = vmul.f32 %v268, 1000.0
    %v273 = vmul.f32 %v269, 1000.0
    %v274 = vmul.f32 %v270, 1000.0
    %v275 = vlaneseq
    %v276 = vand.u32 %v275, 127
    %vm277 = vcmp.eq.s32.totalorder %v276, 0
    %v278 = vsel %vm277, %v171, %v271
    %v279 = vsel %vm277, %v172, %v272
    %v280 = vsel %vm277, %v173, %v273
    %v281 = vsel %vm277, %v174, %v274
    %vm282 = vcmask 15360
    %283 = vst.msk [vmem:[%s1] sm:$0xff] %vm282, %v278
    %284 = vst.msk [vmem:[%s1 + $0x8] sm:$0xff] %vm282, %v279
    %285 = vst.msk [vmem:[%s1 + $0x10] sm:$0xff] %vm282, %v280
    %286 = vst.msk [vmem:[%s1 + $0x18] sm:$0xff] %vm282, %v281
    %v287 = vlaneseq
    %v288 = vshrl.u32 %v287, 7
    %v289 = vadd.s32 %v288, 8
    %v290 = vadd.s32 %v288, 16
    %v291 = vadd.s32 %v288, 24
    %vm292 = vcmp.lt.s32.totalorder %v276, 32
    %v293 = vsel %vm292, %v171, %v271
    %v294 = vsel %vm292, %v172, %v272
    %v295 = vsel %vm292, %v173, %v273
    %v296 = vsel %vm292, %v174, %v274
    %vm297 = vcmp.eq.s32.totalorder %v276, %v288
    %vm298 = vcmp.eq.s32.totalorder %v276, %v289
    %vm299 = vcmp.eq.s32.totalorder %v276, %v290
    %vm300 = vcmp.eq.s32.totalorder %v276, %v291
    %v301 = vadd.s32 %v288, 32
    %v302 = vadd.s32 %v289, 32
    %v303 = vadd.s32 %v290, 32
    %v304 = vadd.s32 %v291, 32
    %vm305 = vcmp.eq.s32.totalorder %v276, %v301
    %vm306 = vcmp.eq.s32.totalorder %v276, %v302
    %vm307 = vcmp.eq.s32.totalorder %v276, %v303
    %vm308 = vcmp.eq.s32.totalorder %v276, %v304
    %vm309 = vmor %vm297, %vm305
    %vm310 = vmor %vm298, %vm306
    %vm311 = vmor %vm299, %vm307
    %vm312 = vmor %vm300, %vm308
    %v313 = vsel %vm309, %v293, 0.0
    %v314 = vsel %vm310, %v294, 0.0
    %v315 = vsel %vm311, %v295, 0.0
    %v316 = vsel %vm312, %v296, 0.0
    %vm317 = vcmask 523264
    %v318 = vsel %vm317, %v313, 0.0
    %v319 = vsel %vm317, %v314, 0.0
    %v320 = vadd.f32 %v318, %v319
    %v321 = vsel %vm317, %v315, 0.0
    %v322 = vadd.f32 %v320, %v321
    %v323 = vsel %vm317, %v316, 0.0
    %v324 = vadd.f32 %v322, %v323
    %v325 = vrot.slane %v324, 4
    %v326 = vadd.f32 %v324, %v325
    %v327 = vrot.slane %v326, 2
    %v328 = vadd.f32 %v326, %v327
    %v329 = vrot.slane %v328, 1
    %v330 = vadd.f32 %v328, %v329
    %v331 = vsub.f32 %v293, %v330
    %v332 = vsub.f32 %v294, %v330
    %v333 = vsub.f32 %v295, %v330
    %v334 = vsub.f32 %v296, %v330
    %v335 = vand.u32 2147483647, %v331
    %v336 = vand.u32 2147483647, %v332
    %v337 = vand.u32 2147483647, %v333
    %v338 = vand.u32 2147483647, %v334
    %v339 = vsel %vm317, %v335, 0.0
    %v340 = vsel %vm317, %v336, 0.0
    %v341 = vadd.f32 %v339, %v340
    %v342 = vsel %vm317, %v337, 0.0
    %v343 = vadd.f32 %v341, %v342
    %v344 = vsel %vm317, %v338, 0.0
    %v345 = vadd.f32 %v343, %v344
    %v346 = vrot.slane %v345, 4
    %v347 = vadd.f32 %v345, %v346
    %v348 = vrot.slane %v347, 2
    %v349 = vadd.f32 %v347, %v348
    %v350 = vrot.slane %v349, 1
    %v351 = vadd.f32 %v349, %v350
    %v352 = vcvt.s32.f32 %v288
    %v353 = vcvt.s32.f32 %v289
    %v354 = vcvt.s32.f32 %v290
    %v355 = vcvt.s32.f32 %v291
    %v356 = vmul.f32 %v352, 2.0
    %v357 = vmul.f32 %v353, 2.0
    %v358 = vmul.f32 %v354, 2.0
    %v359 = vmul.f32 %v355, 2.0
    %v360 = vsub.f32 31.0, %v356
    %v361 = vsub.f32 31.0, %v357
    %v362 = vsub.f32 31.0, %v358
    %v363 = vsub.f32 31.0, %v359
    %v364 = vmul.f32 %v330, %v360
    %v365 = vmul.f32 %v330, %v361
    %v366 = vmul.f32 %v330, %v362
    %v367 = vmul.f32 %v330, %v363
    %v368 = vsub.f32 %v364, %v351
    %v369 = vsub.f32 %v365, %v351
    %v370 = vsub.f32 %v366, %v351
    %v371 = vsub.f32 %v367, %v351
    %v372 = vmul.f32 %v368, 10.0
    %v373 = vmul.f32 %v369, 10.0
    %v374 = vmul.f32 %v370, 10.0
    %v375 = vmul.f32 %v371, 10.0
    %v376 = vsel %vm292, %v372, -1e+30
    %v377 = vsel %vm292, %v373, -1e+30
    %v378 = vsel %vm292, %v374, -1e+30
    %v379 = vsel %vm292, %v375, -1e+30
    %v380 = vsel %vm317, %v376, -inf
    %381 = vmax.xlane.f32.xlu0 %v380
    %v382 = vpop.xlane.xlu0 %381
    %v383 = vsel %vm317, %v377, -inf
    %384 = vmax.xlane.f32.xlu0 %v383
    %v385 = vpop.xlane.xlu0 %384
    %v386 = vsel %vm317, %v378, -inf
    %387 = vmax.xlane.f32.xlu0 %v386
    %v388 = vpop.xlane.xlu0 %387
    %v389 = vsel %vm317, %v379, -inf
    %390 = vmax.xlane.f32.xlu0 %v389
    %v391 = vpop.xlane.xlu0 %390
    %v392 = vsel %vm292, -1e+30, %v372
    %v393 = vsel %vm292, -1e+30, %v373
    %v394 = vsel %vm292, -1e+30, %v374
    %v395 = vsel %vm292, -1e+30, %v375
    %v396 = vsel %vm317, %v392, -inf
    %397 = vmax.xlane.f32.xlu0 %v396
    %v398 = vpop.xlane.xlu0 %397
    %v399 = vsel %vm317, %v393, -inf
    %400 = vmax.xlane.f32.xlu0 %v399
    %v401 = vpop.xlane.xlu0 %400
    %v402 = vsel %vm317, %v394, -inf
    %403 = vmax.xlane.f32.xlu0 %v402
    %v404 = vpop.xlane.xlu0 %403
    %v405 = vsel %vm317, %v395, -inf
    %406 = vmax.xlane.f32.xlu0 %v405
    %v407 = vpop.xlane.xlu0 %406
    %v408 = vsel %vm292, %v382, %v398
    %v409 = vsel %vm292, %v385, %v401
    %v410 = vsel %vm292, %v388, %v404
    %v411 = vsel %vm292, %v391, %v407
    %v412 = vsub.f32 %v372, %v408
    %v413 = vsub.f32 %v373, %v409
    %v414 = vsub.f32 %v374, %v410
    %v415 = vsub.f32 %v375, %v411
    %v416 = vmul.f32 %v412, 1.442695
    %v417 = vpow.pop %v416
    %v418 = vmul.f32 %v413, 1.442695
    %v419 = vpow.pop %v418
    %v420 = vmul.f32 %v414, 1.442695
    %v421 = vpow.pop %v420
    %v422 = vmul.f32 %v415, 1.442695
    %v423 = vpow.pop %v422
    %v424 = vsel %vm292, %v417, 0.0
    %v425 = vsel %vm292, %v419, 0.0
    %v426 = vsel %vm292, %v421, 0.0
    %v427 = vsel %vm292, %v423, 0.0
    %v428 = vsel %vm317, %v424, 0.0
    %429 = vadd.xlane.f32.xlu0 %v428
    %v430 = vpop.xlane.xlu0 %429
    %v431 = vsel %vm317, %v425, 0.0
    %432 = vadd.xlane.f32.xlu0 %v431
    %v433 = vpop.xlane.xlu0 %432
    %v434 = vsel %vm317, %v426, 0.0
    %435 = vadd.xlane.f32.xlu0 %v434
    %v436 = vpop.xlane.xlu0 %435
    %v437 = vsel %vm317, %v427, 0.0
    %438 = vadd.xlane.f32.xlu0 %v437
    %v439 = vpop.xlane.xlu0 %438
    %v440 = vsel %vm317, %v417, 0.0
    %441 = vadd.xlane.f32.xlu0 %v440
    %v442 = vpop.xlane.xlu0 %441
    %v443 = vsel %vm317, %v419, 0.0
    %444 = vadd.xlane.f32.xlu0 %v443
    %v445 = vpop.xlane.xlu0 %444
    %v446 = vsel %vm317, %v421, 0.0
    %447 = vadd.xlane.f32.xlu0 %v446
    %v448 = vpop.xlane.xlu0 %447
    %v449 = vsel %vm317, %v423, 0.0
    %450 = vadd.xlane.f32.xlu0 %v449
    %v451 = vpop.xlane.xlu0 %450
    %v452 = vsub.f32 %v442, %v430
    %v453 = vsub.f32 %v445, %v433
    %v454 = vsub.f32 %v448, %v436
    %v455 = vsub.f32 %v451, %v439
    %v456 = vmul.f32 %v417, %v330
    %v457 = vmul.f32 %v419, %v330
    %v458 = vmul.f32 %v421, %v330
    %v459 = vmul.f32 %v423, %v330
    %v460 = vsel %vm292, %v456, 0.0
    %v461 = vsel %vm292, %v457, 0.0
    %v462 = vsel %vm292, %v458, 0.0
    %v463 = vsel %vm292, %v459, 0.0
    %v464 = vsel %vm317, %v460, 0.0
    %465 = vadd.xlane.f32.xlu0 %v464
    %v466 = vpop.xlane.xlu0 %465
    %v467 = vsel %vm317, %v461, 0.0
    %468 = vadd.xlane.f32.xlu0 %v467
    %v469 = vpop.xlane.xlu0 %468
    %v470 = vsel %vm317, %v462, 0.0
    %471 = vadd.xlane.f32.xlu0 %v470
    %v472 = vpop.xlane.xlu0 %471
    %v473 = vsel %vm317, %v463, 0.0
    %474 = vadd.xlane.f32.xlu0 %v473
    %v475 = vpop.xlane.xlu0 %474
    %v476 = vsel %vm317, %v456, 0.0
    %477 = vadd.xlane.f32.xlu0 %v476
    %v478 = vpop.xlane.xlu0 %477
    %v479 = vsel %vm317, %v457, 0.0
    %480 = vadd.xlane.f32.xlu0 %v479
    %v481 = vpop.xlane.xlu0 %480
    %v482 = vsel %vm317, %v458, 0.0
    %483 = vadd.xlane.f32.xlu0 %v482
    %v484 = vpop.xlane.xlu0 %483
    %v485 = vsel %vm317, %v459, 0.0
    %486 = vadd.xlane.f32.xlu0 %v485
    %v487 = vpop.xlane.xlu0 %486
    %v488 = vsub.f32 %v478, %v466
    %v489 = vsub.f32 %v481, %v469
    %v490 = vsub.f32 %v484, %v472
    %v491 = vsub.f32 %v487, %v475
    %v492 = vrcp.pop %v430
    %v493 = vrcp.pop %v433
    %v494 = vrcp.pop %v436
    %v495 = vrcp.pop %v439
    %v496 = vmul.f32 %v466, %v492
    %v497 = vmul.f32 %v469, %v493
    %v498 = vmul.f32 %v472, %v494
    %v499 = vmul.f32 %v475, %v495
    %v500 = vrcp.pop %v452
    %v501 = vrcp.pop %v453
    %v502 = vrcp.pop %v454
    %v503 = vrcp.pop %v455
    %v504 = vmul.f32 %v488, %v500
    %v505 = vmul.f32 %v489, %v501
    %v506 = vmul.f32 %v490, %v502
    %v507 = vmul.f32 %v491, %v503
    %vm508 = vcmp.eq.s32.totalorder %v288, 31
    %vm509 = vcmp.eq.s32.totalorder %v289, 31
    %vm510 = vcmp.eq.s32.totalorder %v290, 31
    %vm511 = vcmp.eq.s32.totalorder %v291, 31
    %v512 = vsel %vm508, %v496, 0.0
    %v513 = vsel %vm509, %v497, 0.0
    %v514 = vsel %vm510, %v498, 0.0
    %v515 = vsel %vm511, %v499, 0.0
    %v516 = vadd.f32 %v512, %v513
    %v517 = vadd.f32 %v516, %v514
    %v518 = vadd.f32 %v517, %v515
    %v519 = vrot.slane %v518, 4
    %v520 = vadd.f32 %v518, %v519
    %v521 = vrot.slane %v520, 2
    %v522 = vadd.f32 %v520, %v521
    %v523 = vrot.slane %v522, 1
    %v524 = vadd.f32 %v522, %v523
    %v525 = vmul.f32 %v524, 2.0
    %vm526 = vcmp.lt.f32.partialorder %v525, %v524
    %v527 = vadd.f32 %v524, %v525
    %v528 = vmul.f32 %v527, 0.2
    %v529 = vsel %vm526, %v524, %v528
    %v530 = vmul.f32 %v528, 2.0
    %v531 = vsel %vm526, %v524, %v530
    %vm532 = vcmp.eq.s32.totalorder %v288, 0
    %vm533 = vmand %vm532, %vm277
    %v534 = vsel %vm533, %v529, 0.0
    %vm535 = vcmp.eq.s32.totalorder %v276, 1
    %vm536 = vmand %vm532, %vm535
    %v537 = vsel %vm536, %v531, %v534
    %vm538 = vcmp.eq.s32.totalorder %v288, 29
    %vm539 = vcmp.eq.s32.totalorder %v289, 29
    %vm540 = vcmp.eq.s32.totalorder %v290, 29
    %vm541 = vcmp.eq.s32.totalorder %v291, 29
    %v542 = vsel %vm538, %v496, 0.0
    %v543 = vsel %vm539, %v497, 0.0
    %v544 = vsel %vm540, %v498, 0.0
    %v545 = vsel %vm541, %v499, 0.0
    %v546 = vadd.f32 %v542, %v543
    %v547 = vadd.f32 %v546, %v544
    %v548 = vadd.f32 %v547, %v545
    %v549 = vrot.slane %v548, 4
    %v550 = vadd.f32 %v548, %v549
    %v551 = vrot.slane %v550, 2
    %v552 = vadd.f32 %v550, %v551
    %v553 = vrot.slane %v552, 1
    %v554 = vadd.f32 %v552, %v553
    %vm555 = vcmp.ge.s32.totalorder %v288, 29
    %vm556 = vcmp.ge.s32.totalorder %v289, 29
    %vm557 = vcmp.ge.s32.totalorder %v290, 29
    %vm558 = vcmp.ge.s32.totalorder %v291, 29
    %v559 = vsel %vm555, %v496, 0.0
    %v560 = vsel %vm556, %v497, 0.0
    %v561 = vsel %vm557, %v498, 0.0
    %v562 = vsel %vm558, %v499, 0.0
    %v563 = vadd.f32 %v559, %v560
    %v564 = vadd.f32 %v563, %v561
    %v565 = vadd.f32 %v564, %v562
    %v566 = vrot.slane %v565, 4
    %v567 = vadd.f32 %v565, %v566
    %v568 = vrot.slane %v567, 2
    %v569 = vadd.f32 %v567, %v568
    %v570 = vrot.slane %v569, 1
    %v571 = vadd.f32 %v569, %v570
    %v572 = vmul.f32 %v571, 0.33333334
    %v573 = vmul.f32 %v554, 2.0
    %vm574 = vcmp.lt.f32.partialorder %v573, %v572
    %v575 = vmul.f32 %v572, 2.0
    %v576 = vadd.f32 %v554, %v575
    %v577 = vmul.f32 %v576, 0.2
    %v578 = vsel %vm574, %v554, %v577
    %v579 = vmul.f32 %v577, 2.0
    %v580 = vsel %vm574, %v572, %v579
    %vm581 = vcmp.eq.s32.totalorder %v276, 2
    %vm582 = vmand %vm532, %vm581
    %v583 = vsel %vm582, %v578, %v537
    %vm584 = vcmp.eq.s32.totalorder %v276, 3
    %vm585 = vmand %vm532, %vm584
    %v586 = vsel %vm585, %v580, %v583
    %v587 = vsel %vm508, %v504, 0.0
    %v588 = vsel %vm509, %v505, 0.0
    %v589 = vsel %vm510, %v506, 0.0
    %v590 = vsel %vm511, %v507, 0.0
    %v591 = vadd.f32 %v587, %v588
    %v592 = vadd.f32 %v591, %v589
    %v593 = vadd.f32 %v592, %v590
    %v594 = vrot.slane %v593, 4
    %v595 = vadd.f32 %v593, %v594
    %v596 = vrot.slane %v595, 2
    %v597 = vadd.f32 %v595, %v596
    %v598 = vrot.slane %v597, 1
    %v599 = vadd.f32 %v597, %v598
    %v600 = vmul.f32 %v599, 2.0
    %vm601 = vcmp.lt.f32.partialorder %v600, %v599
    %v602 = vadd.f32 %v599, %v600
    %v603 = vmul.f32 %v602, 0.2
    %v604 = vsel %vm601, %v599, %v603
    %v605 = vmul.f32 %v603, 2.0
    %v606 = vsel %vm601, %v599, %v605
    %vm607 = vcmp.eq.s32.totalorder %v288, 1
    %vm608 = vmand %vm607, %vm277
    %v609 = vsel %vm608, %v604, %v586
    %vm610 = vmand %vm607, %vm535
    %v611 = vsel %vm610, %v606, %v609
    %v612 = vsel %vm538, %v504, 0.0
    %v613 = vsel %vm539, %v505, 0.0
    %v614 = vsel %vm540, %v506, 0.0
    %v615 = vsel %vm541, %v507, 0.0
    %v616 = vadd.f32 %v612, %v613
    %v617 = vadd.f32 %v616, %v614
    %v618 = vadd.f32 %v617, %v615
    %v619 = vrot.slane %v618, 4
    %v620 = vadd.f32 %v618, %v619
    %v621 = vrot.slane %v620, 2
    %v622 = vadd.f32 %v620, %v621
    %v623 = vrot.slane %v622, 1
    %v624 = vadd.f32 %v622, %v623
    %v625 = vsel %vm555, %v504, 0.0
    %v626 = vsel %vm556, %v505, 0.0
    %v627 = vsel %vm557, %v506, 0.0
    %v628 = vsel %vm558, %v507, 0.0
    %v629 = vadd.f32 %v625, %v626
    %v630 = vadd.f32 %v629, %v627
    %v631 = vadd.f32 %v630, %v628
    %v632 = vrot.slane %v631, 4
    %v633 = vadd.f32 %v631, %v632
    %v634 = vrot.slane %v633, 2
    %v635 = vadd.f32 %v633, %v634
    %v636 = vrot.slane %v635, 1
    %v637 = vadd.f32 %v635, %v636
    %v638 = vmul.f32 %v637, 0.33333334
    %v639 = vmul.f32 %v624, 2.0
    %vm640 = vcmp.lt.f32.partialorder %v639, %v638
    %v641 = vmul.f32 %v638, 2.0
    %v642 = vadd.f32 %v624, %v641
    %v643 = vmul.f32 %v642, 0.2
    %v644 = vsel %vm640, %v624, %v643
    %v645 = vmul.f32 %v643, 2.0
    %v646 = vsel %vm640, %v638, %v645
    %vm647 = vmand %vm607, %vm581
    %v648 = vsel %vm647, %v644, %v611
    %vm649 = vmand %vm607, %vm584
    %v650 = vsel %vm649, %v646, %v648
    %vm651 = vcmask 25600
    %652 = vst.msk [vmem:[#allocation2] sm:$0x3] %vm651, %v650
    // Predicated region
    $region6: #{discriminator_forward.1} parent=1 // pred_check
      _
    $region7: #{discriminator_forward.1} parent=1 // pred_check_branch
      %654 = sbr.rel (0) target = $region9
    $region8: #{discriminator_forward.1} parent=1 // pred_region
      _
    $region9: #{discriminator_forward.1} parent=1 // pred_fallthru
      _
    // Predicated region
    $region10: #{discriminator_forward.1} parent=1 // pred_check
      _
    $region11: #{discriminator_forward.1} parent=1 // pred_check_branch
      %656 = sbr.rel (0) target = $region13
    $region12: #{discriminator_forward.1} parent=1 // pred_region
      %658 = vsyncadd [#allocation3], 0
      %s660 = sshll.u32 [#allocation2], 4
      %s661 = int_to_ptr.vmem [resolvable:$true] %s660
      %s662 = sshll.u32 %s2, 4
      %s663 = int_to_ptr.hbm [resolvable:$true] %s662
      %665 = dma.vmem_to_hbm [thread:$0]  %s661, 32, %s663, [#allocation3]
    $region13: #{discriminator_forward.1} parent=1 // pred_fallthru
      _
    // Predicated region
    $region14: #{discriminator_forward.1} parent=1 // pred_check
      _
    $region15: #{discriminator_forward.1} parent=1 // pred_check_branch
      %667 = sbr.rel (0) target = $region17
    $region16: #{discriminator_forward.1} parent=1 // pred_region
      _
    $region17: #{discriminator_forward.1} parent=1 // pred_fallthru
      _
    // Predicated region
    $region18: #{discriminator_forward.1} parent=1 // pred_check
      _
    $region19: #{discriminator_forward.1} parent=1 // pred_check_branch
      %669 = sbr.rel (0) target = $region21
    $region20: #{discriminator_forward.1} parent=1 // pred_region
      %671 = dma.done [#allocation3], 32
    $region21: #{discriminator_forward.1} parent=1 // pred_fallthru
      _
    %672 = vsyncpa [#allocation3], 1

</llo_original>
